<compile_context>
chip_gen: v7x
topology: tpu7x:2x2x1
jax: 0.10.0
libtpu: 0.0.40
codegen_flags: <defaults>
</compile_context>

<pallas_src>
import functools

import jax
import jax.numpy as jnp
from jax import lax
from jax.experimental import pallas as pl
from jax.experimental.pallas import tpu as pltpu

_LANE = 128
_MAX_TILE = 16384                 # out block (tile, 10) pads to (tile, 128) f32 in
                                  # VMEM -> 8 MiB/buffer at 16384; x block is ~0.5 MiB.
_VMEM_LIMIT = 32 * 1024 * 1024    # fits the ~18 MiB double-buffered working set.


def _round_up(n, m):
    return ((n + m - 1) // m) * m


def _choose_batch_tile(batch):
    """Lane-aligned batch tile.

    Large tiles amortize the ~0.35 us per-grid-step overhead; targeting
    ceil(B/4) keeps >= 4 grid steps when the batch is big enough so v7x's two
    TensorCores each get >= 2 pipelined steps.  Capped at _MAX_TILE so the
    double-buffered blocks stay inside the 32 MiB scoped-VMEM budget.
    """
    target = _round_up(max(-(-batch // 4), _LANE), _LANE)   # ceil(B/4), lane aligned
    return min(_MAX_TILE, target)


def _simple_nn_kernel(xt_ref, w1t_ref, b1t_ref, w2_ref, b2_ref, o_ref, *,
                      chunk, transposed_out):
    # xt_ref : (1, tile)  f32   batch on the lane axis (lane-dense load)
    # w1t_ref: (64, 1)    b1t_ref: (64, 1)
    # w2_ref : (10, 64) if transposed_out else (64, 10)
    # b2_ref : (10, 1)  if transposed_out else (1, 10)
    # o_ref  : (10, tile) if transposed_out else (tile, 10)
    tile = xt_ref.shape[1]
    w1t = w1t_ref[...]
    b1t = b1t_ref[...]
    w2 = w2_ref[...]
    b2 = b2_ref[...]

    def body(c, carry):
        off = pl.multiple_of(c * chunk, chunk)
        # (1, chunk) lane-dense slice of x; the sublane broadcast happens
        # inside the fused multiply below (no materialized broadcast_in_dim).
        xc = xt_ref[:, pl.ds(off, chunk)]
        # fc1 + ReLU on the VPU as an outer product (d_in == 1 => no MXU pass).
        # (64,1)*(1,chunk) -> (64, chunk); stays in vregs (<= 16 vregs @ 256).
        ht = jnp.maximum(w1t * xc + b1t, 0.0)
        if transposed_out:
            # fc2 on the MXU, batch stays on the N (lane) axis; lane-dense store.
            yt = jnp.dot(w2, ht, preferred_element_type=jnp.float32) + b2
            o_ref[:, pl.ds(off, chunk)] = yt.astype(o_ref.dtype)
        else:
            # Aligned (64, chunk) -> (chunk, 64) XLU transpose (XLU slot is idle
            # here), then fc2 on the MXU in the output's natural orientation,
            # stored straight into the contractual (B, 10) layout.
            h = ht.T
            y = jnp.dot(h, w2, preferred_element_type=jnp.float32) + b2
            o_ref[pl.ds(off, chunk), :] = y.astype(o_ref.dtype)
        return carry

    lax.fori_loop(0, tile // chunk, body, 0, unroll=True)


def simple_nn_forward(x, w1, b1, w2, b2, *, batch_tile=None, transposed_output=False):
    """relu(x @ w1 + b1) @ w2 + b2, fused in one Pallas kernel.

    x: (B, 1) f32.  Weights in (in, out) layout: w1 (1, 64), w2 (64, 10),
    biases (1, 64)/(1, 10) (use `params_from_torch_layout` for real PyTorch
    weights, which are stored (out, in)).

    Returns (B, 10) f32 like the nn.Module.  With `transposed_output=True`
    returns (10, B) (fully lane-dense store, no transpose anywhere) for
    consumers that can use that layout.
    """
    batch, d_in = x.shape
    assert d_in == 1
    d_hidden = w1.shape[1]          # 64
    d_out = w2.shape[1]             # 10

    tile = _choose_batch_tile(batch) if batch_tile is None else batch_tile
    assert tile % _LANE == 0, "batch tile must be lane-aligned (multiple of 128)"
    padded = _round_up(batch, tile)
    chunk = 256 if tile % 256 == 0 else _LANE

    # Free host-side re-layouts (contiguous reshapes / tiny weight transposes).
    xt = x.reshape(1, batch)                      # d_in == 1 => reshape == transpose
    if padded != batch:
        # Zero-pad ragged batches up to a tile multiple: keeps every grid step a
        # full lane-aligned block (no single giant block / VMEM blow-up).
        xt = jnp.pad(xt, ((0, 0), (0, padded - batch)))
    w1t = w1.T                                    # (64, 1)
    b1t = b1.reshape(d_hidden, 1)                 # (64, 1)

    if transposed_output:
        w2_arg, b2_arg = w2.T, b2.reshape(d_out, 1)                    # (10,64), (10,1)
        out_shape = jax.ShapeDtypeStruct((d_out, padded), jnp.float32)
        w2_spec = pl.BlockSpec((d_out, d_hidden), lambda i: (0, 0))
        b2_spec = pl.BlockSpec((d_out, 1), lambda i: (0, 0))
        out_spec = pl.BlockSpec((d_out, tile), lambda i: (0, i))       # lane-dense
    else:
        w2_arg, b2_arg = w2, b2                                        # (64,10), (1,10)
        out_shape = jax.ShapeDtypeStruct((padded, d_out), jnp.float32)
        w2_spec = pl.BlockSpec((d_hidden, d_out), lambda i: (0, 0))
        b2_spec = pl.BlockSpec((1, d_out), lambda i: (0, 0))
        out_spec = pl.BlockSpec((tile, d_out), lambda i: (i, 0))       # (B, 10) direct

    kernel = functools.partial(_simple_nn_kernel, chunk=chunk,
                               transposed_out=transposed_output)

    out = pl.pallas_call(
        kernel,
        out_shape=out_shape,
        grid_spec=pltpu.PrefetchScalarGridSpec(
            num_scalar_prefetch=0,
            grid=(padded // tile,),
            in_specs=[
                pl.BlockSpec((1, tile), lambda i: (0, i)),             # x, lane-dense
                pl.BlockSpec((d_hidden, 1), lambda i: (0, 0)),         # w1^T, resident
                pl.BlockSpec((d_hidden, 1), lambda i: (0, 0)),         # b1^T, resident
                w2_spec,                                               # w2,   resident
                b2_spec,                                               # b2,   resident
            ],
            out_specs=out_spec,
        ),
        compiler_params=pltpu.CompilerParams(
            dimension_semantics=("parallel",),
            vmem_limit_bytes=_VMEM_LIMIT,
        ),
    )(xt, w1t, b1t, w2_arg, b2_arg)

    if padded != batch:
        out = out[:, :batch] if transposed_output else out[:batch]
    return out


def params_from_torch_layout(w1_torch, b1_torch, w2_torch, b2_torch):
    """Convert PyTorch nn.Linear params ((out,in) weights, (out,) biases)
    to the (in,out)/(1,out) layout this wrapper expects."""
    return (jnp.asarray(w1_torch).T, jnp.asarray(b1_torch).reshape(1, -1),
            jnp.asarray(w2_torch).T, jnp.asarray(b2_torch).reshape(1, -1))


def init_params(key):
    # Deterministic init mimicking nn.Linear's U(-1/sqrt(fan_in), 1/sqrt(fan_in)).
    k1, k2, k3, k4 = jax.random.split(key, 4)
    lim1 = 1.0 / jnp.sqrt(1.0)   # fan_in = 1
    lim2 = 1.0 / jnp.sqrt(64.0)  # fan_in = 64
    w1 = jax.random.uniform(k1, (1, 64), jnp.float32, -lim1, lim1)
    b1 = jax.random.uniform(k2, (1, 64), jnp.float32, -lim1, lim1)
    w2 = jax.random.uniform(k3, (64, 10), jnp.float32, -lim2, lim2)
    b2 = jax.random.uniform(k4, (1, 10), jnp.float32, -lim2, lim2)
    return w1, b1, w2, b2


if __name__ == "__main__":
    key = jax.random.PRNGKey(0)
    kx, kp = jax.random.split(key)
    w1, b1, w2, b2 = init_params(kp)

    def ref_fn(xv):
        return jnp.maximum(xv @ w1 + b1, 0.0) @ w2 + b2

    # 1) Small lane-aligned batch (tile=128, grid of 2).
    B = 256
    x = jax.random.normal(kx, (B, 1), jnp.float32)
    out = jax.block_until_ready(simple_nn_forward(x, w1, b1, w2, b2))
    assert out.shape == (B, 10)
    assert jnp.allclose(out, ref_fn(x), atol=1e-5, rtol=1e-5)

    # 2) Larger batch exercising the chunked inner loop (tile=1024, chunk=256, grid=4).
    xb = jax.random.normal(kx, (4096, 1), jnp.float32)
    outb = jax.block_until_ready(simple_nn_forward(xb, w1, b1, w2, b2))
    assert jnp.allclose(outb, ref_fn(xb), atol=1e-5, rtol=1e-5)

    # 3) Ragged batch -> zero-pad + slice path.
    xr = jax.random.normal(kx, (50, 1), jnp.float32)
    outr = jax.block_until_ready(simple_nn_forward(xr, w1, b1, w2, b2))
    assert outr.shape == (50, 10)
    assert jnp.allclose(outr, ref_fn(xr), atol=1e-5, rtol=1e-5)

    # 4) Fully lane-dense (10, B) output path (no transpose anywhere).
    outt = jax.block_until_ready(
        simple_nn_forward(x, w1, b1, w2, b2, transposed_output=True))
    assert outt.shape == (10, B)
    assert jnp.allclose(outt.T, ref_fn(x), atol=1e-5, rtol=1e-5)

    print("KERNEL_OK")
</pallas_src>

<mosaic_0001>
module attributes {stable_mosaic.version = 11 : i64} {
  func.func @_simple_nn_kernel(%arg0: i32, %arg1: memref<1x128xf32, #tpu.memory_space<vmem>>, %arg2: memref<64x1xf32, #tpu.memory_space<vmem>>, %arg3: memref<64x1xf32, #tpu.memory_space<vmem>>, %arg4: memref<64x10xf32, #tpu.memory_space<vmem>>, %arg5: memref<1x10xf32, #tpu.memory_space<vmem>>, %arg6: memref<128x10xf32, #tpu.memory_space<vmem>>) attributes {dimension_semantics = [#tpu.dimension_semantics<parallel>], iteration_bounds = array<i64: 2>, scalar_prefetch = 0 : i64, scratch_operands = 0 : i64, tpu.core_type = #tpu.core_type<tc>, window_params = [{transform_indices = @transform_0, window_bounds = array<i64: 1, 128>}, {pipeline_mode = #tpu.pipeline_mode<synchronous>, transform_indices = @transform_1, window_bounds = array<i64: 64, 1>}, {pipeline_mode = #tpu.pipeline_mode<synchronous>, transform_indices = @transform_2, window_bounds = array<i64: 64, 1>}, {pipeline_mode = #tpu.pipeline_mode<synchronous>, transform_indices = @transform_3, window_bounds = array<i64: 64, 10>}, {pipeline_mode = #tpu.pipeline_mode<synchronous>, transform_indices = @transform_4, window_bounds = array<i64: 1, 10>}, {transform_indices = @transform_5, window_bounds = array<i64: 128, 10>}]} {
    %c0 = arith.constant 0 : index
    %c0_0 = arith.constant 0 : index
    %0 = vector.load %arg2[%c0, %c0_0] : memref<64x1xf32, #tpu.memory_space<vmem>>, vector<64x1xf32>
    %c0_1 = arith.constant 0 : index
    %c0_2 = arith.constant 0 : index
    %1 = vector.load %arg3[%c0_1, %c0_2] : memref<64x1xf32, #tpu.memory_space<vmem>>, vector<64x1xf32>
    %c0_3 = arith.constant 0 : index
    %c0_4 = arith.constant 0 : index
    %2 = vector.load %arg4[%c0_3, %c0_4] : memref<64x10xf32, #tpu.memory_space<vmem>>, vector<64x10xf32>
    %c0_5 = arith.constant 0 : index
    %c0_6 = arith.constant 0 : index
    %3 = vector.load %arg5[%c0_5, %c0_6] : memref<1x10xf32, #tpu.memory_space<vmem>>, vector<1x10xf32>
    %c0_i32 = arith.constant 0 : i32
    %c128_i32 = arith.constant 128 : i32
    %4 = arith.muli %c0_i32, %c128_i32 : i32
    %5 = tpu.assume_multiple %4, 128 : i32
    %c0_7 = arith.constant 0 : index
    %6 = arith.index_cast %5 : i32 to index
    %7 = vector.load %arg1[%c0_7, %6] : memref<1x128xf32, #tpu.memory_space<vmem>>, vector<1x128xf32>
    %8 = vector.broadcast %0 : vector<64x1xf32> to vector<64x128xf32>
    %9 = vector.broadcast %7 : vector<1x128xf32> to vector<64x128xf32>
    %10 = arith.mulf %8, %9 : vector<64x128xf32>
    %11 = vector.broadcast %1 : vector<64x1xf32> to vector<64x128xf32>
    %12 = arith.addf %10, %11 : vector<64x128xf32>
    %cst = arith.constant 0.000000e+00 : f32
    %13 = vector.broadcast %cst : f32 to vector<64x128xf32>
    %14 = arith.maximumf %12, %13 : vector<64x128xf32>
    %15 = tpu.transpose %14, [1, 0] : vector<64x128xf32> -> vector<128x64xf32>
    %cst_8 = arith.constant dense<0.000000e+00> : vector<128x10xf32>
    %16 = tpu.matmul %15, %2, %cst_8 {dimension_numbers = #tpu.dot_dimension_numbers<[1], [0], [0], [1], [0, 0, 1, 1], [], []>} : vector<128x64xf32>, vector<64x10xf32>, vector<128x10xf32> -> vector<128x10xf32>
    %17 = vector.broadcast %3 : vector<1x10xf32> to vector<128x10xf32>
    %18 = arith.addf %16, %17 : vector<128x10xf32>
    %19 = arith.index_cast %5 : i32 to index
    %c0_9 = arith.constant 0 : index
    %20 = vector.load %arg6[%19, %c0_9] : memref<128x10xf32, #tpu.memory_space<vmem>>, vector<128x10xf32>
    tpu.vector_store %arg6[%19, %c0_9], %18 {strides = array<i32>} : memref<128x10xf32, #tpu.memory_space<vmem>>, vector<128x10xf32>,
    %c1_i32 = arith.constant 1 : i32
    return
  }
  func.func @transform_0(%arg0: i32) -> (i32, i32) {
    %c0_i32 = arith.constant 0 : i32
    %c0_i32_0 = arith.constant 0 : i32
    return %c0_i32, %arg0 : i32, i32
  }
  func.func @transform_1(%arg0: i32) -> (i32, i32) {
    %c0_i32 = arith.constant 0 : i32
    %c0_i32_0 = arith.constant 0 : i32
    %c0_i32_1 = arith.constant 0 : i32
    return %c0_i32, %c0_i32_0 : i32, i32
  }
  func.func @transform_2(%arg0: i32) -> (i32, i32) {
    %c0_i32 = arith.constant 0 : i32
    %c0_i32_0 = arith.constant 0 : i32
    %c0_i32_1 = arith.constant 0 : i32
    return %c0_i32, %c0_i32_0 : i32, i32
  }
  func.func @transform_3(%arg0: i32) -> (i32, i32) {
    %c0_i32 = arith.constant 0 : i32
    %c0_i32_0 = arith.constant 0 : i32
    %c0_i32_1 = arith.constant 0 : i32
    return %c0_i32, %c0_i32_0 : i32, i32
  }
  func.func @transform_4(%arg0: i32) -> (i32, i32) {
    %c0_i32 = arith.constant 0 : i32
    %c0_i32_0 = arith.constant 0 : i32
    %c0_i32_1 = arith.constant 0 : i32
    return %c0_i32, %c0_i32_0 : i32, i32
  }
  func.func @transform_5(%arg0: i32) -> (i32, i32) {
    %c0_i32 = arith.constant 0 : i32
    %c0_i32_0 = arith.constant 0 : i32
    return %arg0, %c0_i32 : i32, i32
  }
}

</mosaic_0001>

<llo_original>
// kernel: tpu_custom_call.1
$region0: #{tpu_custom_call.1}
  #allocation0 [shape = 'u32[]', space=smem, size = 0x4, offset = 0x4, fixed_abs, tag = 'smem constant byte address 0x4 - core index']
  #allocation1 [shape = 'u32[144,128]{1,0:T(1,128)}', space=vmem, size = 0x12000, scoped, tag = 'internal scratch']
  %s0 = inlined_call_operand.vmem [shape: f32[1,256], index: 0, kind: input, shape index: {}]
  %s1 = inlined_call_operand.vmem [shape: f32[64,1], index: 1, kind: input, shape index: {}]
  %s2 = inlined_call_operand.vmem [shape: f32[64,1], index: 2, kind: input, shape index: {}]
  %s3 = inlined_call_operand.vmem [shape: f32[64,10], index: 3, kind: input, shape index: {}]
  %s4 = inlined_call_operand.vmem [shape: f32[1,10], index: 4, kind: input, shape index: {}]
  %s5 = inlined_call_operand.vmem [shape: f32[256,10], index: 5, kind: output, shape index: {}]
  %s6 = sld [smem:[#allocation0]]
  $region53: #{tpu_custom_call.1} parent=0
    _
  %s8 = ssub.s32 1, %s6
  %s9 = scalar_select 0, %s8, %s6
  loop: start=0, step=1, limit=4
  $region2: #{tpu_custom_call.1} parent=0 // loop_pre_header
    _
  $region3: #{tpu_custom_call.1} parent=0 // loop_header
    %s11 = sphi 0, %s15
    %p12 = scmp.ge.s32.totalorder %s11, 4
    %s21 = sphi 0, %s23
    %s24 = sphi 0, %s21
    %s25 = sphi 0, %s24
    %s41 = sphi 0, %s25
    %s45 = sphi 0, %s45
    %s47 = sphi 0, %s45
    %s48 = sphi 0, %s47
    %s62 = sphi 0, %s48
    %s66 = sphi 0, %s66
    %s68 = sphi 0, %s66
    %s69 = sphi 0, %s68
    %s83 = sphi 0, %s69
    %s87 = sphi 0, %s87
    %s89 = sphi 0, %s87
    %s90 = sphi 0, %s89
    %s104 = sphi 0, %s90
    %s108 = sphi 0, %s108
    %s110 = sphi 0, %s108
    %s111 = sphi 0, %s110
    %s125 = sphi 0, %s111
    %s131 = sphi 0, %s133
    %s134 = sphi 0, %s131
    %s135 = sphi 0, %s134
    %s151 = sphi 0, %s135
  $region4: #{tpu_custom_call.1} parent=0 // loop_header_branch
    %14 = sbr.rel (%p12) target = $region8
  $region5: #{tpu_custom_call.1} parent=0 // loop_body
    %s16 = ssub.s32 %s11, 1
    %s17 = ssub.s32 %s11, 2
    %s18 = sadd.s32 %s11, 1
    %s19 = ssub.s32 %s11, %s18
    %p20 = scmp.eq.s32.totalorder %s19, 0
    %s22 = sadd.s32 %s21, 1
    %s23 = scalar_select %p20, %s21, %s22
    %p26 = pneg %p20
    %p27 = scmp.eq.s32.totalorder %s11, 1
    %p28 = por %p26, %p27
    %p29 = scmp.ne.s32.totalorder %s21, %s24
    %p30 = scmp.eq.s32.totalorder %s11, 0
    %p31 = por %p29, %p30
    %p32 = scmp.ne.s32.totalorder %s21, %s24
    %p33 = scmp.eq.s32.totalorder %s16, 1
    %p34 = por %p32, %p33
    %p35 = scmp.ne.s32.totalorder %s24, %s25
    %p36 = scmp.eq.s32.totalorder %s16, 0
    %p37 = por %p35, %p36
    %p38 = scmp.ne.s32.totalorder %s24, %s25
    %p39 = scmp.eq.s32.totalorder %s17, 1
    %p40 = por %p38, %p39
    %p42 = scmp.ne.s32.totalorder %s25, %s41
    %p43 = scmp.eq.s32.totalorder %s17, 0
    %p44 = por %p42, %p43
    %s46 = sadd.s32 %s45, 1
    %p49 = scmp.eq.s32.totalorder %s11, 1
    %p50 = scmp.ne.s32.totalorder %s45, %s47
    %p51 = scmp.eq.s32.totalorder %s11, 0
    %p52 = por %p50, %p51
    %p53 = scmp.ne.s32.totalorder %s45, %s47
    %p54 = scmp.eq.s32.totalorder %s16, 1
    %p55 = por %p53, %p54
    %p56 = scmp.ne.s32.totalorder %s47, %s48
    %p57 = scmp.eq.s32.totalorder %s16, 0
    %p58 = por %p56, %p57
    %p59 = scmp.ne.s32.totalorder %s47, %s48
    %p60 = scmp.eq.s32.totalorder %s17, 1
    %p61 = por %p59, %p60
    %p63 = scmp.ne.s32.totalorder %s48, %s62
    %p64 = scmp.eq.s32.totalorder %s17, 0
    %p65 = por %p63, %p64
    %s67 = sadd.s32 %s66, 1
    %p70 = scmp.eq.s32.totalorder %s11, 1
    %p71 = scmp.ne.s32.totalorder %s66, %s68
    %p72 = scmp.eq.s32.totalorder %s11, 0
    %p73 = por %p71, %p72
    %p74 = scmp.ne.s32.totalorder %s66, %s68
    %p75 = scmp.eq.s32.totalorder %s16, 1
    %p76 = por %p74, %p75
    %p77 = scmp.ne.s32.totalorder %s68, %s69
    %p78 = scmp.eq.s32.totalorder %s16, 0
    %p79 = por %p77, %p78
    %p80 = scmp.ne.s32.totalorder %s68, %s69
    %p81 = scmp.eq.s32.totalorder %s17, 1
    %p82 = por %p80, %p81
    %p84 = scmp.ne.s32.totalorder %s69, %s83
    %p85 = scmp.eq.s32.totalorder %s17, 0
    %p86 = por %p84, %p85
    %s88 = sadd.s32 %s87, 1
    %p91 = scmp.eq.s32.totalorder %s11, 1
    %p92 = scmp.ne.s32.totalorder %s87, %s89
    %p93 = scmp.eq.s32.totalorder %s11, 0
    %p94 = por %p92, %p93
    %p95 = scmp.ne.s32.totalorder %s87, %s89
    %p96 = scmp.eq.s32.totalorder %s16, 1
    %p97 = por %p95, %p96
    %p98 = scmp.ne.s32.totalorder %s89, %s90
    %p99 = scmp.eq.s32.totalorder %s16, 0
    %p100 = por %p98, %p99
    %p101 = scmp.ne.s32.totalorder %s89, %s90
    %p102 = scmp.eq.s32.totalorder %s17, 1
    %p103 = por %p101, %p102
    %p105 = scmp.ne.s32.totalorder %s90, %s104
    %p106 = scmp.eq.s32.totalorder %s17, 0
    %p107 = por %p105, %p106
    %s109 = sadd.s32 %s108, 1
    %p112 = scmp.eq.s32.totalorder %s11, 1
    %p113 = scmp.ne.s32.totalorder %s108, %s110
    %p114 = scmp.eq.s32.totalorder %s11, 0
    %p115 = por %p113, %p114
    %p116 = scmp.ne.s32.totalorder %s108, %s110
    %p117 = scmp.eq.s32.totalorder %s16, 1
    %p118 = por %p116, %p117
    %p119 = scmp.ne.s32.totalorder %s110, %s111
    %p120 = scmp.eq.s32.totalorder %s16, 0
    %p121 = por %p119, %p120
    %p122 = scmp.ne.s32.totalorder %s110, %s111
    %p123 = scmp.eq.s32.totalorder %s17, 1
    %p124 = por %p122, %p123
    %p126 = scmp.ne.s32.totalorder %s111, %s125
    %p127 = scmp.eq.s32.totalorder %s17, 0
    %p128 = por %p126, %p127
    %s129 = ssub.s32 %s11, %s18
    %p130 = scmp.eq.s32.totalorder %s129, 0
    %s132 = sadd.s32 %s131, 1
    %s133 = scalar_select %p130, %s131, %s132
    %p136 = pneg %p130
    %p137 = scmp.eq.s32.totalorder %s11, 1
    %p138 = por %p136, %p137
    %p139 = scmp.ne.s32.totalorder %s131, %s134
    %p140 = scmp.eq.s32.totalorder %s11, 0
    %p141 = por %p139, %p140
    %p142 = scmp.ne.s32.totalorder %s131, %s134
    %p143 = scmp.eq.s32.totalorder %s16, 1
    %p144 = por %p142, %p143
    %p145 = scmp.ne.s32.totalorder %s134, %s135
    %p146 = scmp.eq.s32.totalorder %s16, 0
    %p147 = por %p145, %p146
    %p148 = scmp.ne.s32.totalorder %s134, %s135
    %p149 = scmp.eq.s32.totalorder %s17, 1
    %p150 = por %p148, %p149
    %p152 = scmp.ne.s32.totalorder %s135, %s151
    %p153 = scmp.eq.s32.totalorder %s17, 0
    %p154 = por %p152, %p153
    %p155 = scmp.le.s32.totalorder 1, %s11
    %p156 = scmp.lt.s32.totalorder %s11, 3
    %p157 = pnand %p155, %p156
    %p158 = pneg %p157
    // Predicated region
    $region9: #{tpu_custom_call.1} parent=5 // pred_check
      _
    $region10: #{tpu_custom_call.1} parent=5 // pred_check_branch
      %160 = sbr.rel (%p157) target = $region12
    $region11: #{tpu_custom_call.1} parent=5 // pred_region
      %s161 = ssub.s32 %s11, 1
      // Predicated region
      $region13: #{tpu_custom_call.1} parent=11 // pred_check
        %p162 = pneg %p58
      $region14: #{tpu_custom_call.1} parent=11 // pred_check_branch
        %164 = sbr.rel (%p162) target = $region16
      $region15: #{tpu_custom_call.1} parent=11 // pred_region
        _
      $region16: #{tpu_custom_call.1} parent=11 // pred_fallthru
        _
      // Predicated region
      $region17: #{tpu_custom_call.1} parent=11 // pred_check
        %p165 = pneg %p79
      $region18: #{tpu_custom_call.1} parent=11 // pred_check_branch
        %167 = sbr.rel (%p165) target = $region20
      $region19: #{tpu_custom_call.1} parent=11 // pred_region
        _
      $region20: #{tpu_custom_call.1} parent=11 // pred_fallthru
        _
      // Predicated region
      $region21: #{tpu_custom_call.1} parent=11 // pred_check
        %p168 = pneg %p100
      $region22: #{tpu_custom_call.1} parent=11 // pred_check_branch
        %170 = sbr.rel (%p168) target = $region24
      $region23: #{tpu_custom_call.1} parent=11 // pred_region
        _
      $region24: #{tpu_custom_call.1} parent=11 // pred_fallthru
        _
      // Predicated region
      $region25: #{tpu_custom_call.1} parent=11 // pred_check
        %p171 = pneg %p121
      $region26: #{tpu_custom_call.1} parent=11 // pred_check_branch
        %173 = sbr.rel (%p171) target = $region28
      $region27: #{tpu_custom_call.1} parent=11 // pred_region
        _
      $region28: #{tpu_custom_call.1} parent=11 // pred_fallthru
        _
    $region12: #{tpu_custom_call.1} parent=5 // pred_fallthru
      _
    %p174 = scmp.lt.s32.totalorder %s11, 2
    // Predicated region
    $region29: #{tpu_custom_call.1} parent=5 // pred_check
      %p175 = pneg %p174
    $region30: #{tpu_custom_call.1} parent=5 // pred_check_branch
      %177 = sbr.rel (%p175) target = $region32
    $region31: #{tpu_custom_call.1} parent=5 // pred_region
      // Predicated region
      $region33: #{tpu_custom_call.1} parent=31 // pred_check
        %p178 = pneg %p31
      $region34: #{tpu_custom_call.1} parent=31 // pred_check_branch
        %180 = sbr.rel (%p178) target = $region36
      $region35: #{tpu_custom_call.1} parent=31 // pred_region
        %p181 = scmp.lt.s32.totalorder %s11, 1
        %s182 = scalar_select %p181, %s11, 1
        %s183 = scalar_lea.vmem %s0, %s182
      $region36: #{tpu_custom_call.1} parent=31 // pred_fallthru
        _
    $region32: #{tpu_custom_call.1} parent=5 // pred_fallthru
      _
    %p184 = scmp.le.s32.totalorder 1, %s11
    %p185 = scmp.lt.s32.totalorder %s11, 3
    %p186 = pnand %p184, %p185
    %p187 = pneg %p186
    // Predicated region
    $region37: #{tpu_custom_call.1} parent=5 // pred_check
      _
    $region38: #{tpu_custom_call.1} parent=5 // pred_check_branch
      %189 = sbr.rel (%p186) target = $region40
    $region39: #{tpu_custom_call.1} parent=5 // pred_region
      %s190 = ssub.s32 %s11, 1
      %p191 = scmp.lt.s32.totalorder %s16, 1
      %s192 = scalar_select %p191, %s16, 1
      %s193 = scalar_lea.vmem %s0, %s192
      %p194 = pneg %p37
      %p195 = pneg %p34
      %p196 = pneg %p58
      %p197 = pneg %p55
      %p198 = pneg %p79
      %p199 = pneg %p76
      %p200 = pneg %p100
      %p201 = pneg %p97
      %p202 = pneg %p121
      %p203 = pneg %p118
      %p204 = pneg %p147
      %p205 = pneg %p144
      %s206 = smul.u32 16, %s16
      %p207 = scmp.lt.s32.totalorder %s206, 31
      %s208 = scalar_select %p207, %s206, 31
      %s209 = smul.addr %s208, 8
      %s210 = scalar_lea.vmem %s5, %s209
      %p211 = scmp.lt.s32.totalorder %s16, 1
      %s212 = scalar_select %p211, %s16, 1
      %s213 = scalar_lea.vmem %s0, %s212
      %s214 = smul.u32 16, %s16
      %p215 = scmp.lt.s32.totalorder %s214, 31
      %s216 = scalar_select %p215, %s214, 31
      %s217 = smul.addr %s216, 8
      %s218 = scalar_lea.vmem %s5, %s217
      %s219 = smul.u32 16, %s16
      %v220 = vld [vmem:[%s1] sm:$0xff]
      %v221 = vld [vmem:[%s1 + $0x8] sm:$0xff]
      %v222 = vld [vmem:[%s1 + $0x10] sm:$0xff]
      %v223 = vld [vmem:[%s1 + $0x18] sm:$0xff]
      %v224 = vld [vmem:[%s1 + $0x20] sm:$0xff]
      %v225 = vld [vmem:[%s1 + $0x28] sm:$0xff]
      %v226 = vld [vmem:[%s1 + $0x30] sm:$0xff]
      %v227 = vld [vmem:[%s1 + $0x38] sm:$0xff]
      %v228 = vld [vmem:[%s2] sm:$0xff]
      %v229 = vld [vmem:[%s2 + $0x8] sm:$0xff]
      %v230 = vld [vmem:[%s2 + $0x10] sm:$0xff]
      %v231 = vld [vmem:[%s2 + $0x18] sm:$0xff]
      %v232 = vld [vmem:[%s2 + $0x20] sm:$0xff]
      %v233 = vld [vmem:[%s2 + $0x28] sm:$0xff]
      %v234 = vld [vmem:[%s2 + $0x30] sm:$0xff]
      %v235 = vld [vmem:[%s2 + $0x38] sm:$0xff]
      %v236 = vld [vmem:[%s3] sm:$0xff]
      %v237 = vld [vmem:[%s3 + $0x8] sm:$0xff]
      %v238 = vld [vmem:[%s3 + $0x10] sm:$0xff]
      %v239 = vld [vmem:[%s3 + $0x18] sm:$0xff]
      %v240 = vld [vmem:[%s3 + $0x20] sm:$0xff]
      %v241 = vld [vmem:[%s3 + $0x28] sm:$0xff]
      %v242 = vld [vmem:[%s3 + $0x30] sm:$0xff]
      %v243 = vld [vmem:[%s3 + $0x38] sm:$0xff]
      %v244 = vld [vmem:[%s4] sm:$0x1]
      %v245 = vld [vmem:[%s213] sm:$0x1]
      %247 = vset.pattern.permute.xlu0 0
      %248 = vperm.xlu0 %247, %v220
      %v249 = vpop.permute.xlu0 %248
      %252 = vset.pattern.permute.xlu0 0
      %253 = vperm.xlu0 %252, %v221
      %v254 = vpop.permute.xlu0 %253
      %257 = vset.pattern.permute.xlu0 0
      %258 = vperm.xlu0 %257, %v222
      %v259 = vpop.permute.xlu0 %258
      %262 = vset.pattern.permute.xlu0 0
      %263 = vperm.xlu0 %262, %v223
      %v264 = vpop.permute.xlu0 %263
      %267 = vset.pattern.permute.xlu0 0
      %268 = vperm.xlu0 %267, %v224
      %v269 = vpop.permute.xlu0 %268
      %272 = vset.pattern.permute.xlu0 0
      %273 = vperm.xlu0 %272, %v225
      %v274 = vpop.permute.xlu0 %273
      %277 = vset.pattern.permute.xlu0 0
      %278 = vperm.xlu0 %277, %v226
      %v279 = vpop.permute.xlu0 %278
      %282 = vset.pattern.permute.xlu0 0
      %283 = vperm.xlu0 %282, %v227
      %v284 = vpop.permute.xlu0 %283
      %v287 = vlaneseq
      %v288 = vshrl.u32 %v287, 7
      %v289 = vsub.s32 0, %v288
      %v290 = vrot.slane %v245, %v289
      %v292 = vmul.f32 %v249, %v290
      %v293 = vmul.f32 %v254, %v290
      %v294 = vmul.f32 %v259, %v290
      %v295 = vmul.f32 %v264, %v290
      %v296 = vmul.f32 %v269, %v290
      %v297 = vmul.f32 %v274, %v290
      %v298 = vmul.f32 %v279, %v290
      %v299 = vmul.f32 %v284, %v290
      %301 = vset.pattern.permute.xlu0 0
      %302 = vperm.xlu0 %301, %v228
      %v303 = vpop.permute.xlu0 %302
      %306 = vset.pattern.permute.xlu0 0
      %307 = vperm.xlu0 %306, %v229
      %v308 = vpop.permute.xlu0 %307
      %311 = vset.pattern.permute.xlu0 0
      %312 = vperm.xlu0 %311, %v230
      %v313 = vpop.permute.xlu0 %312
      %316 = vset.pattern.permute.xlu0 0
      %317 = vperm.xlu0 %316, %v231
      %v318 = vpop.permute.xlu0 %317
      %321 = vset.pattern.permute.xlu0 0
      %322 = vperm.xlu0 %321, %v232
      %v323 = vpop.permute.xlu0 %322
      %326 = vset.pattern.permute.xlu0 0
      %327 = vperm.xlu0 %326, %v233
      %v328 = vpop.permute.xlu0 %327
      %331 = vset.pattern.permute.xlu0 0
      %332 = vperm.xlu0 %331, %v234
      %v333 = vpop.permute.xlu0 %332
      %336 = vset.pattern.permute.xlu0 0
      %337 = vperm.xlu0 %336, %v235
      %v338 = vpop.permute.xlu0 %337
      %v340 = vadd.f32 %v292, %v303
      %v341 = vadd.f32 %v293, %v308
      %v342 = vadd.f32 %v294, %v313
      %v343 = vadd.f32 %v295, %v318
      %v344 = vadd.f32 %v296, %v323
      %v345 = vadd.f32 %v297, %v328
      %v346 = vadd.f32 %v298, %v333
      %v347 = vadd.f32 %v299, %v338
      %v348 = vmax.f32 %v340, 0.0
      %v349 = vmax.f32 %v341, 0.0
      %v350 = vmax.f32 %v342, 0.0
      %v351 = vmax.f32 %v343, 0.0
      %v352 = vmax.f32 %v344, 0.0
      %v353 = vmax.f32 %v345, 0.0
      %v354 = vmax.f32 %v346, 0.0
      %v355 = vmax.f32 %v347, 0.0
      %356 = vxpose.xlu0.b32.start [1/16] %v348, 128
      %357 = vxpose.xlu0.b32.cont [2/16] %v349, 128
      %358 = vxpose.xlu0.b32.cont [3/16] %v350, 128
      %359 = vxpose.xlu0.b32.cont [4/16] %v351, 128
      %360 = vxpose.xlu0.b32.cont [5/16] %v352, 128
      %361 = vxpose.xlu0.b32.cont [6/16] %v353, 128
      %362 = vxpose.xlu0.b32.cont [7/16] %v354, 128
      %363 = vxpose.xlu0.b32.cont [8/16] %v355, 128
      %364 = vxpose.xlu0.b32.cont [9/16] 0.0, 128
      %365 = vxpose.xlu0.b32.cont [10/16] 0.0, 128
      %366 = vxpose.xlu0.b32.cont [11/16] 0.0, 128
      %367 = vxpose.xlu0.b32.cont [12/16] 0.0, 128
      %368 = vxpose.xlu0.b32.cont [13/16] 0.0, 128
      %369 = vxpose.xlu0.b32.cont [14/16] 0.0, 128
      %370 = vxpose.xlu0.b32.cont [15/16] 0.0, 128
      %371 = vxpose.xlu0.b32.end [16/16] 0.0, 128
      %v372 = vpop.trf.xlu0
      %v373 = vpop.trf.xlu0
      %v374 = vpop.trf.xlu0
      %v375 = vpop.trf.xlu0
      %v376 = vpop.trf.xlu0
      %v377 = vpop.trf.xlu0
      %v378 = vpop.trf.xlu0
      %v379 = vpop.trf.xlu0
      %v380 = vpop.trf.xlu0
      %v381 = vpop.trf.xlu0
      %v382 = vpop.trf.xlu0
      %v383 = vpop.trf.xlu0
      %v384 = vpop.trf.xlu0
      %v385 = vpop.trf.xlu0
      %v386 = vpop.trf.xlu0
      %v387 = vpop.trf.xlu0
      %v389 = vlaneseq
      %v390 = vshrl.u32 %v389, 7
      %v391 = vsub.s32 0, %v390
      %v392 = vrot.slane %v244, %v391
      %vm394 = vcmask 523264
      %v396 = vsel %vm394, %v372, 0
      %v399 = vsel %vm394, %v373, 0
      %v402 = vsel %vm394, %v374, 0
      %v405 = vsel %vm394, %v375, 0
      %v408 = vsel %vm394, %v376, 0
      %v411 = vsel %vm394, %v377, 0
      %v414 = vsel %vm394, %v378, 0
      %v417 = vsel %vm394, %v379, 0
      %v420 = vsel %vm394, %v380, 0
      %v423 = vsel %vm394, %v381, 0
      %v426 = vsel %vm394, %v382, 0
      %v429 = vsel %vm394, %v383, 0
      %v432 = vsel %vm394, %v384, 0
      %v435 = vsel %vm394, %v385, 0
      %v438 = vsel %vm394, %v386, 0
      %v441 = vsel %vm394, %v387, 0
      %443 = vmatprep.subr.mxu0 0.0
      %444 = vmatpush1.msra.mxu0 %v236
      %445 = vmatprep.subr.mxu0 0.0
      %446 = vmatpush1.msra.mxu0 %v237
      %447 = vmatprep.subr.mxu0 0.0
      %448 = vmatpush1.msra.mxu0 %v238
      %449 = vmatprep.subr.mxu0 0.0
      %450 = vmatpush1.msra.mxu0 %v239
      %451 = vmatprep.subr.mxu0 0.0
      %452 = vmatpush1.msra.mxu0 %v240
      %453 = vmatprep.subr.mxu0 0.0
      %454 = vmatpush1.msra.mxu0 %v241
      %455 = vmatprep.subr.mxu0 0.0
      %456 = vmatpush1.msra.mxu0 %v242
      %457 = vmatprep.subr.mxu0 0.0
      %458 = vmatpush1.msra.mxu0 %v243
      %459 = vmatprep.subr.mxu0 0.0
      %460 = vmatpush1.msra.mxu0 0.0
      %461 = vmatprep.subr.mxu0 0.0
      %462 = vmatpush1.msra.mxu0 0.0
      %463 = vmatprep.subr.mxu0 0.0
      %464 = vmatpush1.msra.mxu0 0.0
      %465 = vmatprep.subr.mxu0 0.0
      %466 = vmatpush1.msra.mxu0 0.0
      %467 = vmatprep.subr.mxu0 0.0
      %468 = vmatpush1.msra.mxu0 0.0
      %469 = vmatprep.subr.mxu0 0.0
      %470 = vmatpush1.msra.mxu0 0.0
      %471 = vmatprep.subr.mxu0 0.0
      %472 = vmatpush1.msra.mxu0 0.0
      %473 = vmatprep.subr.mxu0 0.0
      %474 = vmatpush1.msra.mxu0 0.0
      %475 = vmatprep.subr.mxu0 0.0
      %476 = vmatpush1.msra.mxu0 0.0
      %477 = vmatprep.subr.mxu0 0.0
      %478 = vmatpush1.msra.mxu0 0.0
      %479 = vmatprep.subr.mxu0 0.0
      %480 = vmatpush1.msra.mxu0 0.0
      %481 = vmatprep.subr.mxu0 0.0
      %482 = vmatpush1.msra.mxu0 0.0
      %483 = vmatprep.subr.mxu0 0.0
      %484 = vmatpush1.msra.mxu0 0.0
      %485 = vmatprep.subr.mxu0 0.0
      %486 = vmatpush1.msra.mxu0 0.0
      %487 = vmatprep.subr.mxu0 0.0
      %488 = vmatpush1.msra.mxu0 0.0
      %489 = vmatprep.subr.mxu0 0.0
      %490 = vmatpush1.msra.mxu0 0.0
      %491 = vmatprep.subr.mxu0 0.0
      %492 = vmatpush1.msra.mxu0 0.0
      %493 = vmatprep.subr.mxu0 0.0
      %494 = vmatpush1.msra.mxu0 0.0
      %495 = vmatprep.subr.mxu0 0.0
      %496 = vmatpush1.msra.mxu0 0.0
      %497 = vmatprep.subr.mxu0 0.0
      %498 = vmatpush1.msra.mxu0 0.0
      %499 = vmatprep.subr.mxu0 0.0
      %500 = vmatpush1.msra.mxu0 0.0
      %501 = vmatprep.subr.mxu0 0.0
      %502 = vmatpush1.msra.mxu0 0.0
      %503 = vmatprep.subr.mxu0 0.0
      %504 = vmatpush1.msra.mxu0 0.0
      %505 = vmatprep.subr.mxu0 0.0
      %506 = vmatpush1.msra.mxu0 0.0
      %507 = vmatprep.mubr.f32.mxu0 0.0
      %508 = vmatmul.mubr.f32.gmra.mrb[0].mxu0 %v396
      %v509 = vpop.f32.mrb[0].mxu0
      %v510 = vadd.f32 %v392, %v509
      %v511 = vpop.f32.mrb[0].mxu0
      %512 = vmatprep.mubr.f32.mxu0 0.0
      %513 = vmatmul.mubr.f32.gmra.mrb[0].mxu0 %v399
      %v514 = vpop.f32.mrb[0].mxu0
      %v515 = vadd.f32 %v392, %v514
      %v516 = vpop.f32.mrb[0].mxu0
      %517 = vmatprep.mubr.f32.mxu0 0.0
      %518 = vmatmul.mubr.f32.gmra.mrb[0].mxu0 %v402
      %v519 = vpop.f32.mrb[0].mxu0
      %v520 = vadd.f32 %v392, %v519
      %v521 = vpop.f32.mrb[0].mxu0
      %522 = vmatprep.mubr.f32.mxu0 0.0
      %523 = vmatmul.mubr.f32.gmra.mrb[0].mxu0 %v405
      %v524 = vpop.f32.mrb[0].mxu0
      %v525 = vadd.f32 %v392, %v524
      %v526 = vpop.f32.mrb[0].mxu0
      %527 = vmatprep.mubr.f32.mxu0 0.0
      %528 = vmatmul.mubr.f32.gmra.mrb[0].mxu0 %v408
      %v529 = vpop.f32.mrb[0].mxu0
      %v530 = vadd.f32 %v392, %v529
      %v531 = vpop.f32.mrb[0].mxu0
      %532 = vmatprep.mubr.f32.mxu0 0.0
      %533 = vmatmul.mubr.f32.gmra.mrb[0].mxu0 %v411
      %v534 = vpop.f32.mrb[0].mxu0
      %v535 = vadd.f32 %v392, %v534
      %v536 = vpop.f32.mrb[0].mxu0
      %537 = vmatprep.mubr.f32.mxu0 0.0
      %538 = vmatmul.mubr.f32.gmra.mrb[0].mxu0 %v414
      %v539 = vpop.f32.mrb[0].mxu0
      %v540 = vadd.f32 %v392, %v539
      %v541 = vpop.f32.mrb[0].mxu0
      %542 = vmatprep.mubr.f32.mxu0 0.0
      %543 = vmatmul.mubr.f32.gmra.mrb[0].mxu0 %v417
      %v544 = vpop.f32.mrb[0].mxu0
      %v545 = vadd.f32 %v392, %v544
      %v546 = vpop.f32.mrb[0].mxu0
      %547 = vmatprep.mubr.f32.mxu0 0.0
      %548 = vmatmul.mubr.f32.gmra.mrb[0].mxu0 %v420
      %v549 = vpop.f32.mrb[0].mxu0
      %v550 = vadd.f32 %v392, %v549
      %v551 = vpop.f32.mrb[0].mxu0
      %552 = vmatprep.mubr.f32.mxu0 0.0
      %553 = vmatmul.mubr.f32.gmra.mrb[0].mxu0 %v423
      %v554 = vpop.f32.mrb[0].mxu0
      %v555 = vadd.f32 %v392, %v554
      %v556 = vpop.f32.mrb[0].mxu0
      %557 = vmatprep.mubr.f32.mxu0 0.0
      %558 = vmatmul.mubr.f32.gmra.mrb[0].mxu0 %v426
      %v559 = vpop.f32.mrb[0].mxu0
      %v560 = vadd.f32 %v392, %v559
      %v561 = vpop.f32.mrb[0].mxu0
      %562 = vmatprep.mubr.f32.mxu0 0.0
      %563 = vmatmul.mubr.f32.gmra.mrb[0].mxu0 %v429
      %v564 = vpop.f32.mrb[0].mxu0
      %v565 = vadd.f32 %v392, %v564
      %v566 = vpop.f32.mrb[0].mxu0
      %567 = vmatprep.mubr.f32.mxu0 0.0
      %568 = vmatmul.mubr.f32.gmra.mrb[0].mxu0 %v432
      %v569 = vpop.f32.mrb[0].mxu0
      %v570 = vadd.f32 %v392, %v569
      %v571 = vpop.f32.mrb[0].mxu0
      %572 = vmatprep.mubr.f32.mxu0 0.0
      %573 = vmatmul.mubr.f32.gmra.mrb[0].mxu0 %v435
      %v574 = vpop.f32.mrb[0].mxu0
      %v575 = vadd.f32 %v392, %v574
      %v576 = vpop.f32.mrb[0].mxu0
      %577 = vmatprep.mubr.f32.mxu0 0.0
      %578 = vmatmul.mubr.f32.gmra.mrb[0].mxu0 %v438
      %v579 = vpop.f32.mrb[0].mxu0
      %v580 = vadd.f32 %v392, %v579
      %v581 = vpop.f32.mrb[0].mxu0
      %582 = vmatprep.mubr.f32.mxu0 0.0
      %583 = vmatmul.mubr.f32.gmra.mrb[0].mxu0 %v441
      %v584 = vpop.f32.mrb[0].mxu0
      %v585 = vadd.f32 %v392, %v584
      %v586 = vpop.f32.mrb[0].mxu0
      %587 = vdwg.mxu0
      %vm588 = vcmask 80896
      %589 = vst.msk [vmem:[%s218] sm:$0xff] %vm588, %v510
      %590 = vst.msk [vmem:[%s218 + $0x8] sm:$0xff] %vm588, %v515
      %591 = vst.msk [vmem:[%s218 + $0x10] sm:$0xff] %vm588, %v520
      %592 = vst.msk [vmem:[%s218 + $0x18] sm:$0xff] %vm588, %v525
      %593 = vst.msk [vmem:[%s218 + $0x20] sm:$0xff] %vm588, %v530
      %594 = vst.msk [vmem:[%s218 + $0x28] sm:$0xff] %vm588, %v535
      %595 = vst.msk [vmem:[%s218 + $0x30] sm:$0xff] %vm588, %v540
      %596 = vst.msk [vmem:[%s218 + $0x38] sm:$0xff] %vm588, %v545
      %597 = vst.msk [vmem:[%s218 + $0x40] sm:$0xff] %vm588, %v550
      %598 = vst.msk [vmem:[%s218 + $0x48] sm:$0xff] %vm588, %v555
      %599 = vst.msk [vmem:[%s218 + $0x50] sm:$0xff] %vm588, %v560
      %600 = vst.msk [vmem:[%s218 + $0x58] sm:$0xff] %vm588, %v565
      %601 = vst.msk [vmem:[%s218 + $0x60] sm:$0xff] %vm588, %v570
      %602 = vst.msk [vmem:[%s218 + $0x68] sm:$0xff] %vm588, %v575
      %603 = vst.msk [vmem:[%s218 + $0x70] sm:$0xff] %vm588, %v580
      %604 = vst.msk [vmem:[%s218 + $0x78] sm:$0xff] %vm588, %v585
      %s605 = smul.u32 16, %s16
      %p606 = scmp.lt.s32.totalorder %s605, 31
      %s607 = scalar_select %p606, %s605, 31
      %s608 = smul.addr %s607, 8
      %s609 = scalar_lea.vmem %s5, %s608
      // Predicated region
      $region41: #{tpu_custom_call.1} parent=39 // pred_check
        %p610 = pneg %p144
      $region42: #{tpu_custom_call.1} parent=39 // pred_check_branch
        %612 = sbr.rel (%p610) target = $region44
      $region43: #{tpu_custom_call.1} parent=39 // pred_region
        %s613 = smul.u32 16, %s16
      $region44: #{tpu_custom_call.1} parent=39 // pred_fallthru
        _
    $region40: #{tpu_custom_call.1} parent=5 // pred_fallthru
      _
    %p614 = scmp.le.s32.totalorder 2, %s11
    // Predicated region
    $region45: #{tpu_custom_call.1} parent=5 // pred_check
      %p615 = pneg %p614
    $region46: #{tpu_custom_call.1} parent=5 // pred_check_branch
      %617 = sbr.rel (%p615) target = $region48
    $region47: #{tpu_custom_call.1} parent=5 // pred_region
      %s618 = ssub.s32 %s11, 2
      // Predicated region
      $region49: #{tpu_custom_call.1} parent=47 // pred_check
        %p619 = pneg %p150
      $region50: #{tpu_custom_call.1} parent=47 // pred_check_branch
        %621 = sbr.rel (%p619) target = $region52
      $region51: #{tpu_custom_call.1} parent=47 // pred_region
        %s622 = smul.u32 16, %s17
        %p623 = scmp.lt.s32.totalorder %s622, 31
        %s624 = scalar_select %p623, %s622, 31
        %s625 = smul.addr %s624, 8
        %s626 = scalar_lea.vmem %s5, %s625
      $region52: #{tpu_custom_call.1} parent=47 // pred_fallthru
        _
    $region48: #{tpu_custom_call.1} parent=5 // pred_fallthru
      _
  $region6: #{tpu_custom_call.1} parent=0 // loop_footer
    %s15 = sadd.s32 1, %s11
  $region7: #{tpu_custom_call.1} parent=0 // loop_footer_branch
    %10 = sbr.rel target = $region3
  $region8: #{tpu_custom_call.1} parent=0 // loop_exit
    _

</llo_original>
